<compile_context>
chip_gen: v6e
topology: v6e:2x2x1
jax: 0.10.0
libtpu: 0.0.40
codegen_flags: <defaults>
</compile_context>

<pallas_src>
import math
from functools import lru_cache

import jax
import jax.numpy as jnp
from jax.experimental import pallas as pl
from jax.experimental.pallas import tpu as pltpu


def _attn_kernel(q_ref, k_ref, v_ref, mask_ref, o_ref):
    q = q_ref[...]
    k = k_ref[...]
    v = v_ref[...]
    m = mask_ref[...]

    # Fold 1/sqrt(d) into q once (no post-scale pass over the (L, L) scores).
    scale = 1.0 / math.sqrt(q.shape[-1])
    qs = q * scale

    # Batched q @ k^T contracting on the last dims -> no transposed operand
    # materialized; feeds the MXU directly. Keep everything float32 (v5e has
    # no bf16 VPU/EUP path; MXU is nowhere near the bottleneck here).
    s = jnp.einsum("bld,bsd->bls", qs, k, preferred_element_type=jnp.float32)

    # General additive mask (broadcast (1, L, L) -> (B, L, L)). Kept to
    # preserve the module's forward semantics for arbitrary masks.
    s = s + m

    # Numerically stable softmax; normalization folded in after attn @ v so
    # the second matmul does not wait on the reciprocal.
    s_max = jnp.max(s, axis=-1, keepdims=True)
    p = jnp.exp(s - s_max)
    denom = jnp.sum(p, axis=-1, keepdims=True)
    out = jnp.einsum("bls,bsd->bld", p, v, preferred_element_type=jnp.float32)
    out = out * pl.reciprocal(denom, approx=False)  # exact: keeps 1e-5 tolerance

    o_ref[...] = out.astype(o_ref.dtype)


@lru_cache(maxsize=None)
def _build_call(B, L, D, mask_B, dtype_name):
    dtype = jnp.dtype(dtype_name)
    # Advisory cost so XLA schedules sensibly around the custom call when this
    # attention is embedded in a larger jitted graph.
    flops = 4 * B * L * L * D                      # two batched matmuls
    bytes_accessed = (4 * B * L * D + mask_B * L * L) * dtype.itemsize
    transcendentals = B * L * L                    # exp per score element

    vmem_spec = pl.BlockSpec(memory_space=pltpu.MemorySpace.VMEM)
    return pl.pallas_call(
        _attn_kernel,
        out_shape=jax.ShapeDtypeStruct((B, L, D), dtype),
        in_specs=[vmem_spec, vmem_spec, vmem_spec, vmem_spec],
        out_specs=vmem_spec,
        cost_estimate=pl.CostEstimate(
            flops=flops,
            transcendentals=transcendentals,
            bytes_accessed=bytes_accessed,
        ),
    )
    # TODO(synk): if B/L ever grow to MXU scale, reintroduce a batch grid with
    # dimension_semantics=("parallel",) so v7x's second TensorCore is used.


@jax.jit
def sdpa_with_mask(q, k2, v2, mask):
    """q, k2, v2: (B, L, D); mask: (1, L, L) additive. Returns (B, L, D)."""
    B, L, D = q.shape
    assert k2.shape == (B, L, D) and v2.shape == (B, L, D)
    assert mask.shape == (1, L, L)
    call = _build_call(B, L, D, mask.shape[0], str(q.dtype))
    return call(q, k2, v2, mask)


def _reference(q, k2, v2, mask):
    qk = jnp.einsum("bld,bsd->bls", q, k2) / math.sqrt(q.shape[-1])
    qk = qk + mask
    attn = jax.nn.softmax(qk, axis=-1)
    return jnp.einsum("bls,bsd->bld", attn, v2)


if __name__ == "__main__":
    # Small shapes consistent with the module's forward: batch=2, seq=8, hidden=32.
    B, L, D = 2, 8, 32
    key = jax.random.PRNGKey(0)
    kq, kk, kv, km = jax.random.split(key, 4)

    q = jax.random.normal(kq, (B, L, D), dtype=jnp.float32)
    k2 = jax.random.normal(kk, (B, L, D), dtype=jnp.float32)
    v2 = jax.random.normal(kv, (B, L, D), dtype=jnp.float32)

    # Literal mask from the PyTorch script: `.fill_(-1e9)` overwrites the whole
    # tensor, so every logit gets the same additive constant.
    mask_uniform = jnp.full((1, L, L), -1000000000.0, dtype=jnp.float32)
    # A non-uniform additive mask to exercise the general mask path as well.
    mask_random = jnp.where(jax.random.uniform(km, (1, L, L)) > 0.7,
                            -1000000000.0, 0.0).astype(jnp.float32)

    ok = True
    for mask in (mask_uniform, mask_random):
        out = jax.block_until_ready(sdpa_with_mask(q, k2, v2, mask))
        ref = _reference(q, k2, v2, mask)
        ok = ok and bool(jnp.allclose(out, ref, atol=1e-5, rtol=1e-5))

    assert ok, "mismatch vs reference"
    print("KERNEL_OK")
</pallas_src>

<mosaic_0001>
module attributes {stable_mosaic.version = 11 : i64} {
  func.func @_attn_kernel(%arg0: memref<2x8x32xf32, #tpu.memory_space<vmem>>, %arg1: memref<2x8x32xf32, #tpu.memory_space<vmem>>, %arg2: memref<2x8x32xf32, #tpu.memory_space<vmem>>, %arg3: memref<1x8x8xf32, #tpu.memory_space<vmem>>, %arg4: memref<2x8x32xf32, #tpu.memory_space<vmem>>) attributes {dimension_semantics = [], scalar_prefetch = 0 : i64, scratch_operands = 0 : i64, tpu.core_type = #tpu.core_type<tc>} {
    %c0 = arith.constant 0 : index
    %c0_0 = arith.constant 0 : index
    %c0_1 = arith.constant 0 : index
    %0 = vector.load %arg0[%c0, %c0_0, %c0_1] : memref<2x8x32xf32, #tpu.memory_space<vmem>>, vector<2x8x32xf32>
    %c0_2 = arith.constant 0 : index
    %c0_3 = arith.constant 0 : index
    %c0_4 = arith.constant 0 : index
    %1 = vector.load %arg1[%c0_2, %c0_3, %c0_4] : memref<2x8x32xf32, #tpu.memory_space<vmem>>, vector<2x8x32xf32>
    %c0_5 = arith.constant 0 : index
    %c0_6 = arith.constant 0 : index
    %c0_7 = arith.constant 0 : index
    %2 = vector.load %arg2[%c0_5, %c0_6, %c0_7] : memref<2x8x32xf32, #tpu.memory_space<vmem>>, vector<2x8x32xf32>
    %c0_8 = arith.constant 0 : index
    %c0_9 = arith.constant 0 : index
    %c0_10 = arith.constant 0 : index
    %3 = vector.load %arg3[%c0_8, %c0_9, %c0_10] : memref<1x8x8xf32, #tpu.memory_space<vmem>>, vector<1x8x8xf32>
    %cst = arith.constant 0.176776692 : f32
    %4 = vector.broadcast %cst : f32 to vector<2x8x32xf32>
    %5 = arith.mulf %0, %4 : vector<2x8x32xf32>
    "tpu.trace_start"() <{level = 10 : i32, message = "bld,bsd->bls"}> : () -> ()
    %cst_11 = arith.constant dense<0.000000e+00> : vector<2x8x8xf32>
    %6 = tpu.matmul %5, %1, %cst_11 {dimension_numbers = #tpu.dot_dimension_numbers<[2], [2], [1], [1], [0, 0, 0, 1, 1, 1], [0], [0]>} : vector<2x8x32xf32>, vector<2x8x32xf32>, vector<2x8x8xf32> -> vector<2x8x8xf32>
    "tpu.trace_stop"() : () -> ()
    %7 = vector.broadcast %3 : vector<1x8x8xf32> to vector<2x8x8xf32>
    %8 = arith.addf %6, %7 : vector<2x8x8xf32>
    %cst_12 = arith.constant dense<0xFF800000> : vector<2x8xf32>
    %9 = vector.multi_reduction <maximumf>, %8, %cst_12 [2] : vector<2x8x8xf32> to vector<2x8xf32>
    %10 = vector.shape_cast %9 : vector<2x8xf32> to vector<2x8x1xf32>
    %11 = vector.broadcast %10 : vector<2x8x1xf32> to vector<2x8x8xf32>
    %12 = arith.subf %8, %11 : vector<2x8x8xf32>
    %13 = math.exp %12 : vector<2x8x8xf32>
    %cst_13 = arith.constant dense<0.000000e+00> : vector<2x8xf32>
    %14 = vector.multi_reduction <add>, %13, %cst_13 [2] : vector<2x8x8xf32> to vector<2x8xf32>
    %15 = vector.shape_cast %14 : vector<2x8xf32> to vector<2x8x1xf32>
    "tpu.trace_start"() <{level = 10 : i32, message = "bls,bsd->bld"}> : () -> ()
    %cst_14 = arith.constant dense<0.000000e+00> : vector<2x8x32xf32>
    %16 = tpu.matmul %13, %2, %cst_14 {dimension_numbers = #tpu.dot_dimension_numbers<[2], [1], [1], [2], [0, 0, 0, 1, 1, 2], [0], [0]>} : vector<2x8x8xf32>, vector<2x8x32xf32>, vector<2x8x32xf32> -> vector<2x8x32xf32>
    "tpu.trace_stop"() : () -> ()
    %17 = tpu.reciprocal %15 : vector<2x8x1xf32> -> vector<2x8x1xf32>
    %18 = vector.broadcast %17 : vector<2x8x1xf32> to vector<2x8x32xf32>
    %19 = arith.mulf %16, %18 : vector<2x8x32xf32>
    %c0_15 = arith.constant 0 : index
    %c0_16 = arith.constant 0 : index
    %c0_17 = arith.constant 0 : index
    %20 = vector.load %arg4[%c0_15, %c0_16, %c0_17] : memref<2x8x32xf32, #tpu.memory_space<vmem>>, vector<2x8x32xf32>
    tpu.vector_store %arg4[%c0_15, %c0_16, %c0_17], %19 {strides = array<i32>} : memref<2x8x32xf32, #tpu.memory_space<vmem>>, vector<2x8x32xf32>,
    return
  }
}

</mosaic_0001>

<llo_original>
// kernel: sdpa_with_mask.1
$region0: #{sdpa_with_mask.1}
  #allocation0 [shape = 'u32[]', space=smem, size = 0x4, offset = 0x4, fixed_abs, tag = 'smem constant byte address 0x4 - core index']
  #allocation1 [shape = 'u32[144,128]{1,0:T(1,128)}', space=vmem, size = 0x12000, scoped, tag = 'internal scratch']
  %s0 = inlined_call_operand.hbm [shape: f32[2,8,32], index: 0, kind: input, shape index: {}]
  %s1 = inlined_call_operand.hbm [shape: f32[2,8,32], index: 1, kind: input, shape index: {}]
  %s2 = inlined_call_operand.hbm [shape: f32[2,8,32], index: 2, kind: input, shape index: {}]
  %s3 = inlined_call_operand.hbm [shape: f32[1,8,8], index: 3, kind: input, shape index: {}]
  %s4 = inlined_call_operand.hbm [shape: f32[2,8,32], index: 4, kind: output, shape index: {}]
  %s5 = sld [smem:[#allocation0]]
  $region42: #{sdpa_with_mask.1} parent=0
    _
  %s7 = ssub.s32 1, %s5
  %s8 = scalar_select 0, %s7, %s5
  $region1: #{sdpa_with_mask.1} parent=0
    #allocation2 [shape = 'u8[8192]{0}', space=vmem, size = 0x2000, scoped, tag = 'input window, operand 0, single buffered']
    #allocation3 [shape = 's32[1]{0}', space=sflag, size = 0x4, scoped, tag = 'scoped memory for sdpa_with_mask.1']
    #allocation4 [shape = 's32[1]{0}', space=sflag, size = 0x4, scoped, tag = 'scoped memory for sdpa_with_mask.1']
    #allocation5 [shape = 'u8[8192]{0}', space=vmem, size = 0x2000, scoped, tag = 'input window, operand 1, single buffered']
    #allocation6 [shape = 's32[1]{0}', space=sflag, size = 0x4, scoped, tag = 'scoped memory for sdpa_with_mask.1']
    #allocation7 [shape = 'u8[8192]{0}', space=vmem, size = 0x2000, scoped, tag = 'input window, operand 2, single buffered']
    #allocation8 [shape = 'u8[4096]{0}', space=vmem, size = 0x1000, scoped, tag = 'input window, operand 3, single buffered']
    #allocation9 [shape = 's32[1]{0}', space=sflag, size = 0x4, scoped, tag = 'scoped memory for sdpa_with_mask.1']
    #allocation10 [shape = 'u8[8192]{0}', space=vmem, size = 0x2000, scoped, tag = 'output window, operand 0, single buffered']
    %9 = vsyncpa [#allocation3], 0
    %10 = vsyncpa [#allocation6], 0
    %11 = vsyncpa [#allocation9], 0
    %12 = vsyncpa [#allocation4], 0
    // Predicated region
    $region2: #{sdpa_with_mask.1} parent=1 // pred_check
      _
    $region3: #{sdpa_with_mask.1} parent=1 // pred_check_branch
      %14 = sbr.rel (0) target = $region5
    $region4: #{sdpa_with_mask.1} parent=1 // pred_region
      %s16 = ssub.s32 256, 256
      %17 = vsyncadd [#allocation3], %s16
      %s18 = sshll.u32 [#allocation2], 4
      %s19 = int_to_ptr.vmem [resolvable:$true] %s18
      %24 = dma.hbm_to_vmem [thread:$0]  %s0, 256, %s19, [#allocation3], 128, 128, 8
    $region5: #{sdpa_with_mask.1} parent=1 // pred_fallthru
      _
    // Predicated region
    $region6: #{sdpa_with_mask.1} parent=1 // pred_check
      _
    $region7: #{sdpa_with_mask.1} parent=1 // pred_check_branch
      %26 = sbr.rel (0) target = $region9
    $region8: #{sdpa_with_mask.1} parent=1 // pred_region
      %s28 = ssub.s32 256, 256
      %29 = vsyncadd [#allocation6], %s28
      %s30 = sshll.u32 [#allocation5], 4
      %s31 = int_to_ptr.vmem [resolvable:$true] %s30
      %36 = dma.hbm_to_vmem [thread:$0]  %s1, 256, %s31, [#allocation6], 128, 128, 8
    $region9: #{sdpa_with_mask.1} parent=1 // pred_fallthru
      _
    // Predicated region
    $region10: #{sdpa_with_mask.1} parent=1 // pred_check
      _
    $region11: #{sdpa_with_mask.1} parent=1 // pred_check_branch
      %38 = sbr.rel (0) target = $region13
    $region12: #{sdpa_with_mask.1} parent=1 // pred_region
      %s40 = ssub.s32 256, 256
      %41 = vsyncadd [#allocation6], %s40
      %s42 = sshll.u32 [#allocation7], 4
      %s43 = int_to_ptr.vmem [resolvable:$true] %s42
      %48 = dma.hbm_to_vmem [thread:$0]  %s2, 256, %s43, [#allocation6], 128, 128, 8
    $region13: #{sdpa_with_mask.1} parent=1 // pred_fallthru
      _
    // Predicated region
    $region14: #{sdpa_with_mask.1} parent=1 // pred_check
      _
    $region15: #{sdpa_with_mask.1} parent=1 // pred_check_branch
      %50 = sbr.rel (0) target = $region17
    $region16: #{sdpa_with_mask.1} parent=1 // pred_region
      %s52 = ssub.s32 128, 128
      %53 = vsyncadd [#allocation9], %s52
      %s55 = sshll.u32 [#allocation8], 4
      %s56 = int_to_ptr.vmem [resolvable:$true] %s55
      %58 = dma.hbm_to_vmem [thread:$0]  %s3, 128, %s56, [#allocation9]
    $region17: #{sdpa_with_mask.1} parent=1 // pred_fallthru
      _
    // Predicated region
    $region18: #{sdpa_with_mask.1} parent=1 // pred_check
      _
    $region19: #{sdpa_with_mask.1} parent=1 // pred_check_branch
      %60 = sbr.rel (0) target = $region21
    $region20: #{sdpa_with_mask.1} parent=1 // pred_region
      %61 = dma.done [#allocation3], 256
    $region21: #{sdpa_with_mask.1} parent=1 // pred_fallthru
      _
    // Predicated region
    $region22: #{sdpa_with_mask.1} parent=1 // pred_check
      _
    $region23: #{sdpa_with_mask.1} parent=1 // pred_check_branch
      %63 = sbr.rel (0) target = $region25
    $region24: #{sdpa_with_mask.1} parent=1 // pred_region
      %64 = dma.done [#allocation6], 256
    $region25: #{sdpa_with_mask.1} parent=1 // pred_fallthru
      _
    // Predicated region
    $region26: #{sdpa_with_mask.1} parent=1 // pred_check
      _
    $region27: #{sdpa_with_mask.1} parent=1 // pred_check_branch
      %66 = sbr.rel (0) target = $region29
    $region28: #{sdpa_with_mask.1} parent=1 // pred_region
      %67 = dma.done [#allocation6], 256
    $region29: #{sdpa_with_mask.1} parent=1 // pred_fallthru
      _
    // Predicated region
    $region30: #{sdpa_with_mask.1} parent=1 // pred_check
      _
    $region31: #{sdpa_with_mask.1} parent=1 // pred_check_branch
      %69 = sbr.rel (0) target = $region33
    $region32: #{sdpa_with_mask.1} parent=1 // pred_region
      %70 = dma.done [#allocation9], 128
    $region33: #{sdpa_with_mask.1} parent=1 // pred_fallthru
      _
    %v71 = vld [vmem:[#allocation2] sm:$0xff]
    %v72 = vld [vmem:[#allocation2 + $0x8] sm:$0xff]
    %v73 = vld [vmem:[#allocation5] sm:$0xff]
    %v74 = vld [vmem:[#allocation5 + $0x8] sm:$0xff]
    %v75 = vld [vmem:[#allocation7] sm:$0xff]
    %v76 = vld [vmem:[#allocation7 + $0x8] sm:$0xff]
    %v77 = vld [vmem:[#allocation8] sm:$0xff]
    %v78 = vmul.f32 %v71, 0.17677669
    %v79 = vmul.f32 %v72, 0.17677669
    %vm80 = vcmask 261120
    %v82 = vsel %vm80, %v78, 0
    %v85 = vsel %vm80, %v73, 0
    %87 = vmatprep.subr.mxu0 0.0
    %88 = vmatpush1.xpose.msra.mxu0 0.0
    %89 = vmatprep.subr.mxu0 0.0
    %90 = vmatpush1.xpose.msra.mxu0 0.0
    %91 = vmatprep.subr.mxu0 0.0
    %92 = vmatpush1.xpose.msra.mxu0 0.0
    %93 = vmatprep.subr.mxu0 0.0
    %94 = vmatpush1.xpose.msra.mxu0 0.0
    %95 = vmatprep.subr.mxu0 0.0
    %96 = vmatpush1.xpose.msra.mxu0 0.0
    %97 = vmatprep.subr.mxu0 0.0
    %98 = vmatpush1.xpose.msra.mxu0 0.0
    %99 = vmatprep.subr.mxu0 0.0
    %100 = vmatpush1.xpose.msra.mxu0 0.0
    %101 = vmatprep.subr.mxu0 0.0
    %102 = vmatpush1.xpose.msra.mxu0 0.0
    %103 = vmatprep.subr.mxu0 0.0
    %104 = vmatpush1.xpose.msra.mxu0 0.0
    %105 = vmatprep.subr.mxu0 0.0
    %106 = vmatpush1.xpose.msra.mxu0 0.0
    %107 = vmatprep.subr.mxu0 0.0
    %108 = vmatpush1.xpose.msra.mxu0 0.0
    %109 = vmatprep.subr.mxu0 0.0
    %110 = vmatpush1.xpose.msra.mxu0 0.0
    %111 = vmatprep.subr.mxu0 0.0
    %112 = vmatpush1.xpose.msra.mxu0 0.0
    %113 = vmatprep.subr.mxu0 0.0
    %114 = vmatpush1.xpose.msra.mxu0 0.0
    %115 = vmatprep.subr.mxu0 0.0
    %116 = vmatpush1.xpose.msra.mxu0 0.0
    %117 = vmatprep.subr.mxu0 0.0
    %118 = vmatpush1.xpose.msra.mxu0 %v85
    %119 = vmatprep.subr.mxu0 0.0
    %120 = vmatpush2.xpose.msra.mxu0 0.0
    %121 = vmatprep.subr.mxu0 0.0
    %122 = vmatpush2.xpose.msra.mxu0 0.0
    %123 = vmatprep.subr.mxu0 0.0
    %124 = vmatpush2.xpose.msra.mxu0 0.0
    %125 = vmatprep.subr.mxu0 0.0
    %126 = vmatpush2.xpose.msra.mxu0 0.0
    %127 = vmatprep.subr.mxu0 0.0
    %128 = vmatpush2.xpose.msra.mxu0 0.0
    %129 = vmatprep.subr.mxu0 0.0
    %130 = vmatpush2.xpose.msra.mxu0 0.0
    %131 = vmatprep.subr.mxu0 0.0
    %132 = vmatpush2.xpose.msra.mxu0 0.0
    %133 = vmatprep.subr.mxu0 0.0
    %134 = vmatpush2.xpose.msra.mxu0 0.0
    %135 = vmatprep.subr.mxu0 0.0
    %136 = vmatpush2.xpose.msra.mxu0 0.0
    %137 = vmatprep.subr.mxu0 0.0
    %138 = vmatpush2.xpose.msra.mxu0 0.0
    %139 = vmatprep.subr.mxu0 0.0
    %140 = vmatpush2.xpose.msra.mxu0 0.0
    %141 = vmatprep.subr.mxu0 0.0
    %142 = vmatpush2.xpose.msra.mxu0 0.0
    %143 = vmatprep.subr.mxu0 0.0
    %144 = vmatpush2.xpose.msra.mxu0 0.0
    %145 = vmatprep.subr.mxu0 0.0
    %146 = vmatpush2.xpose.msra.mxu0 0.0
    %147 = vmatprep.subr.mxu0 0.0
    %148 = vmatpush2.xpose.msra.mxu0 0.0
    %149 = vmatprep.subr.mxu0 0.0
    %150 = vmatpush2.xpose.msra.mxu0 0.0
    %151 = vmatprep.mubr.f32.mxu0 0.0
    %152 = vmatmul.mubr.f32.gmra.mxu0 %v82
    %v153 = vpop.f32.mrf.mxu0
    %v154 = vadd.f32 %v77, %v153
    %v155 = vpop.f32.mrf.mxu0
    %156 = vdwg.mxu0
    %v158 = vsel %vm80, %v79, 0
    %v161 = vsel %vm80, %v74, 0
    %163 = vmatprep.subr.mxu0 0.0
    %164 = vmatpush1.xpose.msra.mxu0 0.0
    %165 = vmatprep.subr.mxu0 0.0
    %166 = vmatpush1.xpose.msra.mxu0 0.0
    %167 = vmatprep.subr.mxu0 0.0
    %168 = vmatpush1.xpose.msra.mxu0 0.0
    %169 = vmatprep.subr.mxu0 0.0
    %170 = vmatpush1.xpose.msra.mxu0 0.0
    %171 = vmatprep.subr.mxu0 0.0
    %172 = vmatpush1.xpose.msra.mxu0 0.0
    %173 = vmatprep.subr.mxu0 0.0
    %174 = vmatpush1.xpose.msra.mxu0 0.0
    %175 = vmatprep.subr.mxu0 0.0
    %176 = vmatpush1.xpose.msra.mxu0 0.0
    %177 = vmatprep.subr.mxu0 0.0
    %178 = vmatpush1.xpose.msra.mxu0 0.0
    %179 = vmatprep.subr.mxu0 0.0
    %180 = vmatpush1.xpose.msra.mxu0 0.0
    %181 = vmatprep.subr.mxu0 0.0
    %182 = vmatpush1.xpose.msra.mxu0 0.0
    %183 = vmatprep.subr.mxu0 0.0
    %184 = vmatpush1.xpose.msra.mxu0 0.0
    %185 = vmatprep.subr.mxu0 0.0
    %186 = vmatpush1.xpose.msra.mxu0 0.0
    %187 = vmatprep.subr.mxu0 0.0
    %188 = vmatpush1.xpose.msra.mxu0 0.0
    %189 = vmatprep.subr.mxu0 0.0
    %190 = vmatpush1.xpose.msra.mxu0 0.0
    %191 = vmatprep.subr.mxu0 0.0
    %192 = vmatpush1.xpose.msra.mxu0 0.0
    %193 = vmatprep.subr.mxu0 0.0
    %194 = vmatpush1.xpose.msra.mxu0 %v161
    %195 = vmatprep.subr.mxu0 0.0
    %196 = vmatpush2.xpose.msra.mxu0 0.0
    %197 = vmatprep.subr.mxu0 0.0
    %198 = vmatpush2.xpose.msra.mxu0 0.0
    %199 = vmatprep.subr.mxu0 0.0
    %200 = vmatpush2.xpose.msra.mxu0 0.0
    %201 = vmatprep.subr.mxu0 0.0
    %202 = vmatpush2.xpose.msra.mxu0 0.0
    %203 = vmatprep.subr.mxu0 0.0
    %204 = vmatpush2.xpose.msra.mxu0 0.0
    %205 = vmatprep.subr.mxu0 0.0
    %206 = vmatpush2.xpose.msra.mxu0 0.0
    %207 = vmatprep.subr.mxu0 0.0
    %208 = vmatpush2.xpose.msra.mxu0 0.0
    %209 = vmatprep.subr.mxu0 0.0
    %210 = vmatpush2.xpose.msra.mxu0 0.0
    %211 = vmatprep.subr.mxu0 0.0
    %212 = vmatpush2.xpose.msra.mxu0 0.0
    %213 = vmatprep.subr.mxu0 0.0
    %214 = vmatpush2.xpose.msra.mxu0 0.0
    %215 = vmatprep.subr.mxu0 0.0
    %216 = vmatpush2.xpose.msra.mxu0 0.0
    %217 = vmatprep.subr.mxu0 0.0
    %218 = vmatpush2.xpose.msra.mxu0 0.0
    %219 = vmatprep.subr.mxu0 0.0
    %220 = vmatpush2.xpose.msra.mxu0 0.0
    %221 = vmatprep.subr.mxu0 0.0
    %222 = vmatpush2.xpose.msra.mxu0 0.0
    %223 = vmatprep.subr.mxu0 0.0
    %224 = vmatpush2.xpose.msra.mxu0 0.0
    %225 = vmatprep.subr.mxu0 0.0
    %226 = vmatpush2.xpose.msra.mxu0 0.0
    %227 = vmatprep.mubr.f32.mxu0 0.0
    %228 = vmatmul.mubr.f32.gmra.mxu0 %v158
    %v229 = vpop.f32.mrf.mxu0
    %v230 = vadd.f32 %v77, %v229
    %v231 = vpop.f32.mrf.mxu0
    %232 = vdwg.mxu0
    %vm233 = vcmask 64512
    %v234 = vsel %vm233, %v154, -inf
    %235 = vmax.xlane.f32.xlu0 %v234
    %v236 = vpop.xlane.xlu0 %235
    %v237 = vsel %vm233, %v230, -inf
    %238 = vmax.xlane.f32.xlu0 %v237
    %v239 = vpop.xlane.xlu0 %238
    %v240 = vsub.f32 %v154, %v236
    %v241 = vsub.f32 %v230, %v239
    %v242 = vmul.f32 %v240, 1.442695
    %v243 = vpow.pop %v242
    %v244 = vmul.f32 %v241, 1.442695
    %v245 = vpow.pop %v244
    %v246 = vsel %vm233, %v243, 0.0
    %247 = vadd.xlane.f32.xlu0 %v246
    %v248 = vpop.xlane.xlu0 %247
    %v249 = vsel %vm233, %v245, 0.0
    %250 = vadd.xlane.f32.xlu0 %v249
    %v251 = vpop.xlane.xlu0 %250
    %v253 = vsel %vm233, %v243, 0
    %255 = vmatprep.subr.mxu0 0.0
    %256 = vmatpush1.msra.mxu0 0.0
    %257 = vmatprep.subr.mxu0 0.0
    %258 = vmatpush1.msra.mxu0 0.0
    %259 = vmatprep.subr.mxu0 0.0
    %260 = vmatpush1.msra.mxu0 0.0
    %261 = vmatprep.subr.mxu0 0.0
    %262 = vmatpush1.msra.mxu0 0.0
    %263 = vmatprep.subr.mxu0 0.0
    %264 = vmatpush1.msra.mxu0 0.0
    %265 = vmatprep.subr.mxu0 0.0
    %266 = vmatpush1.msra.mxu0 0.0
    %267 = vmatprep.subr.mxu0 0.0
    %268 = vmatpush1.msra.mxu0 0.0
    %269 = vmatprep.subr.mxu0 0.0
    %270 = vmatpush1.msra.mxu0 0.0
    %271 = vmatprep.subr.mxu0 0.0
    %272 = vmatpush1.msra.mxu0 0.0
    %273 = vmatprep.subr.mxu0 0.0
    %274 = vmatpush1.msra.mxu0 0.0
    %275 = vmatprep.subr.mxu0 0.0
    %276 = vmatpush1.msra.mxu0 0.0
    %277 = vmatprep.subr.mxu0 0.0
    %278 = vmatpush1.msra.mxu0 0.0
    %279 = vmatprep.subr.mxu0 0.0
    %280 = vmatpush1.msra.mxu0 0.0
    %281 = vmatprep.subr.mxu0 0.0
    %282 = vmatpush1.msra.mxu0 0.0
    %283 = vmatprep.subr.mxu0 0.0
    %284 = vmatpush1.msra.mxu0 0.0
    %285 = vmatprep.subr.mxu0 0.0
    %286 = vmatpush1.msra.mxu0 %v75
    %287 = vmatprep.subr.mxu0 0.0
    %288 = vmatpush2.msra.mxu0 0.0
    %289 = vmatprep.subr.mxu0 0.0
    %290 = vmatpush2.msra.mxu0 0.0
    %291 = vmatprep.subr.mxu0 0.0
    %292 = vmatpush2.msra.mxu0 0.0
    %293 = vmatprep.subr.mxu0 0.0
    %294 = vmatpush2.msra.mxu0 0.0
    %295 = vmatprep.subr.mxu0 0.0
    %296 = vmatpush2.msra.mxu0 0.0
    %297 = vmatprep.subr.mxu0 0.0
    %298 = vmatpush2.msra.mxu0 0.0
    %299 = vmatprep.subr.mxu0 0.0
    %300 = vmatpush2.msra.mxu0 0.0
    %301 = vmatprep.subr.mxu0 0.0
    %302 = vmatpush2.msra.mxu0 0.0
    %303 = vmatprep.subr.mxu0 0.0
    %304 = vmatpush2.msra.mxu0 0.0
    %305 = vmatprep.subr.mxu0 0.0
    %306 = vmatpush2.msra.mxu0 0.0
    %307 = vmatprep.subr.mxu0 0.0
    %308 = vmatpush2.msra.mxu0 0.0
    %309 = vmatprep.subr.mxu0 0.0
    %310 = vmatpush2.msra.mxu0 0.0
    %311 = vmatprep.subr.mxu0 0.0
    %312 = vmatpush2.msra.mxu0 0.0
    %313 = vmatprep.subr.mxu0 0.0
    %314 = vmatpush2.msra.mxu0 0.0
    %315 = vmatprep.subr.mxu0 0.0
    %316 = vmatpush2.msra.mxu0 0.0
    %317 = vmatprep.subr.mxu0 0.0
    %318 = vmatpush2.msra.mxu0 0.0
    %319 = vmatprep.mubr.f32.mxu0 0.0
    %320 = vmatmul.mubr.f32.gmra.mxu0 %v253
    %v321 = vpop.f32.mrf.mxu0
    %v322 = vadd.f32 0.0, %v321
    %v323 = vpop.f32.mrf.mxu0
    %324 = vdwg.mxu0
    %v326 = vsel %vm233, %v245, 0
    %328 = vmatprep.subr.mxu0 0.0
    %329 = vmatpush1.msra.mxu0 0.0
    %330 = vmatprep.subr.mxu0 0.0
    %331 = vmatpush1.msra.mxu0 0.0
    %332 = vmatprep.subr.mxu0 0.0
    %333 = vmatpush1.msra.mxu0 0.0
    %334 = vmatprep.subr.mxu0 0.0
    %335 = vmatpush1.msra.mxu0 0.0
    %336 = vmatprep.subr.mxu0 0.0
    %337 = vmatpush1.msra.mxu0 0.0
    %338 = vmatprep.subr.mxu0 0.0
    %339 = vmatpush1.msra.mxu0 0.0
    %340 = vmatprep.subr.mxu0 0.0
    %341 = vmatpush1.msra.mxu0 0.0
    %342 = vmatprep.subr.mxu0 0.0
    %343 = vmatpush1.msra.mxu0 0.0
    %344 = vmatprep.subr.mxu0 0.0
    %345 = vmatpush1.msra.mxu0 0.0
    %346 = vmatprep.subr.mxu0 0.0
    %347 = vmatpush1.msra.mxu0 0.0
    %348 = vmatprep.subr.mxu0 0.0
    %349 = vmatpush1.msra.mxu0 0.0
    %350 = vmatprep.subr.mxu0 0.0
    %351 = vmatpush1.msra.mxu0 0.0
    %352 = vmatprep.subr.mxu0 0.0
    %353 = vmatpush1.msra.mxu0 0.0
    %354 = vmatprep.subr.mxu0 0.0
    %355 = vmatpush1.msra.mxu0 0.0
    %356 = vmatprep.subr.mxu0 0.0
    %357 = vmatpush1.msra.mxu0 0.0
    %358 = vmatprep.subr.mxu0 0.0
    %359 = vmatpush1.msra.mxu0 %v76
    %360 = vmatprep.subr.mxu0 0.0
    %361 = vmatpush2.msra.mxu0 0.0
    %362 = vmatprep.subr.mxu0 0.0
    %363 = vmatpush2.msra.mxu0 0.0
    %364 = vmatprep.subr.mxu0 0.0
    %365 = vmatpush2.msra.mxu0 0.0
    %366 = vmatprep.subr.mxu0 0.0
    %367 = vmatpush2.msra.mxu0 0.0
    %368 = vmatprep.subr.mxu0 0.0
    %369 = vmatpush2.msra.mxu0 0.0
    %370 = vmatprep.subr.mxu0 0.0
    %371 = vmatpush2.msra.mxu0 0.0
    %372 = vmatprep.subr.mxu0 0.0
    %373 = vmatpush2.msra.mxu0 0.0
    %374 = vmatprep.subr.mxu0 0.0
    %375 = vmatpush2.msra.mxu0 0.0
    %376 = vmatprep.subr.mxu0 0.0
    %377 = vmatpush2.msra.mxu0 0.0
    %378 = vmatprep.subr.mxu0 0.0
    %379 = vmatpush2.msra.mxu0 0.0
    %380 = vmatprep.subr.mxu0 0.0
    %381 = vmatpush2.msra.mxu0 0.0
    %382 = vmatprep.subr.mxu0 0.0
    %383 = vmatpush2.msra.mxu0 0.0
    %384 = vmatprep.subr.mxu0 0.0
    %385 = vmatpush2.msra.mxu0 0.0
    %386 = vmatprep.subr.mxu0 0.0
    %387 = vmatpush2.msra.mxu0 0.0
    %388 = vmatprep.subr.mxu0 0.0
    %389 = vmatpush2.msra.mxu0 0.0
    %390 = vmatprep.subr.mxu0 0.0
    %391 = vmatpush2.msra.mxu0 0.0
    %392 = vmatprep.mubr.f32.mxu0 0.0
    %393 = vmatmul.mubr.f32.gmra.mxu0 %v326
    %v394 = vpop.f32.mrf.mxu0
    %v395 = vadd.f32 0.0, %v394
    %v396 = vpop.f32.mrf.mxu0
    %397 = vdwg.mxu0
    %v398 = vrcp.pop %v248
    %v399 = vrcp.pop %v251
    %v400 = vmul.f32 %v322, %v398
    %v401 = vmul.f32 %v395, %v399
    %402 = vst.msk [vmem:[#allocation10] sm:$0xff] %vm80, %v400
    %403 = vst.msk [vmem:[#allocation10 + $0x8] sm:$0xff] %vm80, %v401
    // Predicated region
    $region34: #{sdpa_with_mask.1} parent=1 // pred_check
      _
    $region35: #{sdpa_with_mask.1} parent=1 // pred_check_branch
      %405 = sbr.rel (0) target = $region37
    $region36: #{sdpa_with_mask.1} parent=1 // pred_region
      %s407 = ssub.s32 256, 256
      %408 = vsyncadd [#allocation4], %s407
      %s409 = sshll.u32 [#allocation10], 4
      %s410 = int_to_ptr.vmem [resolvable:$true] %s409
      %415 = dma.vmem_to_hbm [thread:$0]  %s410, 256, %s4, [#allocation4], 128, 128, 8
    $region37: #{sdpa_with_mask.1} parent=1 // pred_fallthru
      _
    // Predicated region
    $region38: #{sdpa_with_mask.1} parent=1 // pred_check
      _
    $region39: #{sdpa_with_mask.1} parent=1 // pred_check_branch
      %417 = sbr.rel (0) target = $region41
    $region40: #{sdpa_with_mask.1} parent=1 // pred_region
      %418 = dma.done [#allocation4], 256
    $region41: #{sdpa_with_mask.1} parent=1 // pred_fallthru
      _
    %419 = vsyncpa [#allocation3], 1
    %420 = vsyncpa [#allocation6], 1
    %421 = vsyncpa [#allocation9], 1
    %422 = vsyncpa [#allocation4], 1

</llo_original>
